<compile_context>
chip_gen: v5e
topology: v5e:2x2
jax: 0.10.0
libtpu: 0.0.40
codegen_flags: <defaults>
</compile_context>

<pallas_src>
import jax
import jax.numpy as jnp
from jax.experimental import pallas as pl
from jax.experimental.pallas import tpu as pltpu

LANE = 128  # TPU vreg lane width


# ---------------------------------------------------------------------------
# Kernels (feature-major: features on sublanes, batch on lanes)
# ---------------------------------------------------------------------------
def _mlp_trunk(x_ref, w1_ref, b1_ref, w2_ref, b2_ref):
    """Shared ReLU-MLP trunk. Returns h2 as bf16 [L2, tb]."""
    x = x_ref[...].astype(jnp.bfloat16)                                   # [S,  tb]
    h1 = jnp.dot(w1_ref[...], x, preferred_element_type=jnp.float32)      # [L1, tb]
    h1 = jnp.maximum(h1 + b1_ref[...], 0.0)                               # f32 bias/ReLU
    h2 = jnp.dot(w2_ref[...], h1.astype(jnp.bfloat16),
                 preferred_element_type=jnp.float32)                      # [L2, tb]
    h2 = jnp.maximum(h2 + b2_ref[...], 0.0)
    return h2.astype(jnp.bfloat16)


def actor_binary_kernel(x_ref, w1_ref, b1_ref, w2_ref, b2_ref,
                        w3d_ref, b3d_ref, probs_ref):
    """action_size == 2 fast path: softmax over two classes equals
    sigmoid(logit1 - logit0); the weight difference is precomputed in the
    wrapper so only a single output row is produced by the last matmul."""
    h2 = _mlp_trunk(x_ref, w1_ref, b1_ref, w2_ref, b2_ref)                # [L2, tb] bf16
    d = jnp.dot(w3d_ref[...], h2, preferred_element_type=jnp.float32)     # [1,  tb]
    d = d + b3d_ref[...]
    p1 = jax.nn.sigmoid(d)                                                # EUP, f32
    probs_ref[...] = jnp.concatenate([1.0 - p1, p1], axis=0)              # [2, tb] lane-dense


def actor_softmax_kernel(x_ref, w1_ref, b1_ref, w2_ref, b2_ref,
                         w3_ref, b3_ref, probs_ref):
    """Generic action_size: numerically stable softmax over the (sublane) class
    axis.  Exact divide so every column sums to 1."""
    h2 = _mlp_trunk(x_ref, w1_ref, b1_ref, w2_ref, b2_ref)                # [L2, tb] bf16
    logits = jnp.dot(w3_ref[...], h2,
                     preferred_element_type=jnp.float32) + b3_ref[...]    # [A, tb]
    m = jnp.max(logits, axis=0, keepdims=True)                            # [1, tb]
    e = jnp.exp(logits - m)
    denom = jnp.sum(e, axis=0, keepdims=True)
    probs_ref[...] = e / denom                                            # [A, tb] lane-dense


# ---------------------------------------------------------------------------
# Wrapper
# ---------------------------------------------------------------------------
def _tensorcores_per_chip():
    """2 on v7x (two TensorCores per chip), else 1 (v5e/v6e). Safe fallback 1."""
    try:
        kind = jax.devices()[0].device_kind.lower()
    except Exception:
        return 1
    return 2 if ("v7" in kind or "7x" in kind) else 1


def _batch_tiling(B):
    """Generation-aware batch tiling: one tile on single-TC chips, exactly two
    'parallel' tiles on v7x.  Tile width is a multiple of 128 lanes so every
    activation and the output slab is lane-dense."""
    n_tiles = _tensorcores_per_chip()
    if B < n_tiles * LANE:
        n_tiles = 1
    tile = LANE * pl.cdiv(B, LANE * n_tiles)
    return tile, tile * n_tiles, n_tiles


def actor_forward(x, params):
    """x: [B, state_size] f32.  Returns Categorical probs [B, action_size] f32."""
    w1, b1, w2, b2, w3, b3 = params          # w*: [out, in] bf16, b*: [out, 1] f32
    B, S = x.shape
    L1, L2, A = w1.shape[0], w2.shape[0], w3.shape[0]

    tb, Bp, n_tiles = _batch_tiling(B)

    # Feature-major input [S, Bp]; zero-pad batch up to the lane multiple
    # (padded columns produce valid finite probs and are sliced off below).
    x_t = x.T
    if Bp != B:
        x_t = jnp.pad(x_t, ((0, 0), (0, Bp - B)))

    if A == 2:
        # Pre-difference the last layer: softmax(2) == sigmoid(l1 - l0).
        w3k = (w3.astype(jnp.float32)[1:2]
               - w3.astype(jnp.float32)[0:1]).astype(jnp.bfloat16)        # [1, L2]
        b3k = b3[1:2] - b3[0:1]                                           # [1, 1] f32
        kernel = actor_binary_kernel
        a_cols = 1
        transcendentals = Bp                    # one sigmoid per column
    else:
        w3k, b3k = w3, b3
        kernel = actor_softmax_kernel
        a_cols = A
        transcendentals = Bp * A + Bp           # exp per logit + divide per column

    # Weights / biases: constant index_map -> DMA'd into VMEM once, resident
    # across all (<= 2) grid steps.
    const = lambda arr: pl.BlockSpec(arr.shape, lambda i: (0, 0))

    flops = 2 * Bp * (S * L1 + L1 * L2 + L2 * a_cols)
    bytes_accessed = (x_t.size * x_t.dtype.itemsize
                      + sum(a.size * a.dtype.itemsize
                            for a in (w1, b1, w2, b2, w3k, b3k))
                      + A * Bp * 4)

    probs_fm = pl.pallas_call(
        kernel,
        out_shape=jax.ShapeDtypeStruct((A, Bp), jnp.float32),
        grid_spec=pltpu.PrefetchScalarGridSpec(
            num_scalar_prefetch=0,
            grid=(n_tiles,),
            in_specs=[
                pl.BlockSpec((S, tb), lambda i: (0, i)),     # state tile (batch on lanes)
                const(w1), const(b1),
                const(w2), const(b2),
                const(w3k), const(b3k),
            ],
            out_specs=pl.BlockSpec((A, tb), lambda i: (0, i)),   # lane-dense output
        ),
        compiler_params=pltpu.CompilerParams(
            dimension_semantics=("parallel",)),                  # v7x: one tile per TC
        cost_estimate=pl.CostEstimate(
            flops=flops, transcendentals=transcendentals,
            bytes_accessed=bytes_accessed),
    )(x_t, w1, b1, w2, b2, w3k, b3k)                             # [A, Bp]

    # Back to batch-major [B, A] (wrapper-side layout plumbing, negligible).
    return probs_fm[:, :B].T


# ---------------------------------------------------------------------------
# Params / reference
# ---------------------------------------------------------------------------
def init_actor_params(key, state_size, action_size, L1, L2):
    """nn.Linear-style init (uniform +-1/sqrt(fan_in)).  Weights stored
    feature-major [out, in] (PyTorch's native layout) in bf16; biases [out,1] f32."""
    ks = jax.random.split(key, 6)

    def linear(kw, kb, fan_in, fan_out):
        bound = 1.0 / jnp.sqrt(jnp.float32(fan_in))
        w = jax.random.uniform(kw, (fan_out, fan_in), jnp.float32,
                               minval=-bound, maxval=bound).astype(jnp.bfloat16)
        b = jax.random.uniform(kb, (fan_out, 1), jnp.float32,
                               minval=-bound, maxval=bound)
        return w, b

    w1, b1 = linear(ks[0], ks[1], state_size, L1)
    w2, b2 = linear(ks[2], ks[3], L1, L2)
    w3, b3 = linear(ks[4], ks[5], L2, action_size)
    return (w1, b1, w2, b2, w3, b3)


def actor_reference(x, params):
    """Pure-JAX reference using the same bf16 weight/activation quantization."""
    w1, b1, w2, b2, w3, b3 = params
    h = jnp.dot(x.astype(jnp.bfloat16), w1.T,
                preferred_element_type=jnp.float32) + b1.T
    h = jnp.maximum(h, 0.0)
    h = jnp.dot(h.astype(jnp.bfloat16), w2.T,
                preferred_element_type=jnp.float32) + b2.T
    h = jnp.maximum(h, 0.0)
    logits = jnp.dot(h.astype(jnp.bfloat16), w3.T,
                     preferred_element_type=jnp.float32) + b3.T
    return jax.nn.softmax(logits, axis=-1)


if __name__ == "__main__":
    # Sizes from the module docstring: state_size=4, L1=128, L2=256, action_size=2.
    STATE_SIZE, ACTION_SIZE, L1, L2 = 4, 2, 128, 256
    BATCH = 256   # vectorized envs / rollout steps; any batch is lane-padded

    key = jax.random.PRNGKey(0)
    k_params, k_x, k_params3, k_x2 = jax.random.split(key, 4)

    # --- action_size == 2 fast path (the module's configuration) ---
    params = init_actor_params(k_params, STATE_SIZE, ACTION_SIZE, L1, L2)
    x = jax.random.normal(k_x, (BATCH, STATE_SIZE), jnp.float32)

    probs = jax.block_until_ready(actor_forward(x, params))
    ref = actor_reference(x, params)
    assert probs.shape == (BATCH, ACTION_SIZE)
    assert bool(jnp.all(jnp.isfinite(probs)))
    assert jnp.allclose(jnp.sum(probs, axis=-1), 1.0, atol=1e-5)
    # bf16 matmul operands with f32 accumulation -> loosened tolerance.
    assert jnp.allclose(probs, ref, atol=2e-2), float(jnp.max(jnp.abs(probs - ref)))

    # --- ragged batch (exercises the lane-padding path) ---
    x_small = jax.random.normal(k_x2, (5, STATE_SIZE), jnp.float32)
    probs_small = jax.block_until_ready(actor_forward(x_small, params))
    assert probs_small.shape == (5, ACTION_SIZE)
    assert jnp.allclose(probs_small, actor_reference(x_small, params), atol=2e-2)

    # --- generic softmax path (action_size != 2) ---
    params3 = init_actor_params(k_params3, STATE_SIZE, 3, L1, L2)
    probs3 = jax.block_until_ready(actor_forward(x, params3))
    assert probs3.shape == (BATCH, 3)
    assert jnp.allclose(jnp.sum(probs3, axis=-1), 1.0, atol=1e-5)
    assert jnp.allclose(probs3, actor_reference(x, params3), atol=2e-2)

    # TODO(synk): torch.distributions.Categorical sampling / log_prob is
    # host-side distribution machinery; the kernel returns its parameters
    # (the class probabilities).
    print("KERNEL_OK")
</pallas_src>

<mosaic_0001>
module attributes {stable_mosaic.version = 11 : i64} {
  func.func @actor_binary_kernel(%arg0: i32, %arg1: memref<4x256xf32, #tpu.memory_space<vmem>>, %arg2: memref<128x4xbf16, #tpu.memory_space<vmem>>, %arg3: memref<128x1xf32, #tpu.memory_space<vmem>>, %arg4: memref<256x128xbf16, #tpu.memory_space<vmem>>, %arg5: memref<256x1xf32, #tpu.memory_space<vmem>>, %arg6: memref<1x256xbf16, #tpu.memory_space<vmem>>, %arg7: memref<1x1xf32, #tpu.memory_space<vmem>>, %arg8: memref<2x256xf32, #tpu.memory_space<vmem>>) attributes {dimension_semantics = [#tpu.dimension_semantics<parallel>], iteration_bounds = array<i64: 1>, scalar_prefetch = 0 : i64, scratch_operands = 0 : i64, tpu.core_type = #tpu.core_type<tc>, window_params = [{transform_indices = @transform_0, window_bounds = array<i64: 4, 256>}, {pipeline_mode = #tpu.pipeline_mode<synchronous>, transform_indices = @transform_1, window_bounds = array<i64: 128, 4>}, {pipeline_mode = #tpu.pipeline_mode<synchronous>, transform_indices = @transform_2, window_bounds = array<i64: 128, 1>}, {pipeline_mode = #tpu.pipeline_mode<synchronous>, transform_indices = @transform_3, window_bounds = array<i64: 256, 128>}, {pipeline_mode = #tpu.pipeline_mode<synchronous>, transform_indices = @transform_4, window_bounds = array<i64: 256, 1>}, {pipeline_mode = #tpu.pipeline_mode<synchronous>, transform_indices = @transform_5, window_bounds = array<i64: 1, 256>}, {pipeline_mode = #tpu.pipeline_mode<synchronous>, transform_indices = @transform_6, window_bounds = array<i64: 1, 1>}, {transform_indices = @transform_7, window_bounds = array<i64: 2, 256>}]} {
    %c0 = arith.constant 0 : index
    %c0_0 = arith.constant 0 : index
    %0 = vector.load %arg1[%c0, %c0_0] : memref<4x256xf32, #tpu.memory_space<vmem>>, vector<4x256xf32>
    %1 = arith.truncf %0 : vector<4x256xf32> to vector<4x256xbf16>
    %c0_1 = arith.constant 0 : index
    %c0_2 = arith.constant 0 : index
    %2 = vector.load %arg2[%c0_1, %c0_2] : memref<128x4xbf16, #tpu.memory_space<vmem>>, vector<128x4xbf16>
    %cst = arith.constant dense<0.000000e+00> : vector<128x256xf32>
    %3 = tpu.matmul %2, %1, %cst {dimension_numbers = #tpu.dot_dimension_numbers<[1], [0], [0], [1], [0, 0, 1, 1], [], []>} : vector<128x4xbf16>, vector<4x256xbf16>, vector<128x256xf32> -> vector<128x256xf32>
    %c0_3 = arith.constant 0 : index
    %c0_4 = arith.constant 0 : index
    %4 = vector.load %arg3[%c0_3, %c0_4] : memref<128x1xf32, #tpu.memory_space<vmem>>, vector<128x1xf32>
    %5 = vector.broadcast %4 : vector<128x1xf32> to vector<128x256xf32>
    %6 = arith.addf %3, %5 : vector<128x256xf32>
    %cst_5 = arith.constant 0.000000e+00 : f32
    %7 = vector.broadcast %cst_5 : f32 to vector<128x256xf32>
    %8 = arith.maximumf %6, %7 : vector<128x256xf32>
    %c0_6 = arith.constant 0 : index
    %c0_7 = arith.constant 0 : index
    %9 = vector.load %arg4[%c0_6, %c0_7] : memref<256x128xbf16, #tpu.memory_space<vmem>>, vector<256x128xbf16>
    %10 = arith.truncf %8 : vector<128x256xf32> to vector<128x256xbf16>
    %cst_8 = arith.constant dense<0.000000e+00> : vector<256x256xf32>
    %11 = tpu.matmul %9, %10, %cst_8 {dimension_numbers = #tpu.dot_dimension_numbers<[1], [0], [0], [1], [0, 0, 1, 1], [], []>} : vector<256x128xbf16>, vector<128x256xbf16>, vector<256x256xf32> -> vector<256x256xf32>
    %c0_9 = arith.constant 0 : index
    %c0_10 = arith.constant 0 : index
    %12 = vector.load %arg5[%c0_9, %c0_10] : memref<256x1xf32, #tpu.memory_space<vmem>>, vector<256x1xf32>
    %13 = vector.broadcast %12 : vector<256x1xf32> to vector<256x256xf32>
    %14 = arith.addf %11, %13 : vector<256x256xf32>
    %cst_11 = arith.constant 0.000000e+00 : f32
    %15 = vector.broadcast %cst_11 : f32 to vector<256x256xf32>
    %16 = arith.maximumf %14, %15 : vector<256x256xf32>
    %17 = arith.truncf %16 : vector<256x256xf32> to vector<256x256xbf16>
    %c0_12 = arith.constant 0 : index
    %c0_13 = arith.constant 0 : index
    %18 = vector.load %arg6[%c0_12, %c0_13] : memref<1x256xbf16, #tpu.memory_space<vmem>>, vector<1x256xbf16>
    %cst_14 = arith.constant dense<0.000000e+00> : vector<1x256xf32>
    %19 = tpu.matmul %18, %17, %cst_14 {dimension_numbers = #tpu.dot_dimension_numbers<[1], [0], [0], [1], [0, 0, 1, 1], [], []>} : vector<1x256xbf16>, vector<256x256xbf16>, vector<1x256xf32> -> vector<1x256xf32>
    %c0_15 = arith.constant 0 : index
    %c0_16 = arith.constant 0 : index
    %20 = vector.load %arg7[%c0_15, %c0_16] : memref<1x1xf32, #tpu.memory_space<vmem>>, vector<1x1xf32>
    %21 = vector.broadcast %20 : vector<1x1xf32> to vector<1x256xf32>
    %22 = arith.addf %19, %21 : vector<1x256xf32>
    %23 = arith.negf %22 : vector<1x256xf32>
    %24 = math.exp %23 : vector<1x256xf32>
    %cst_17 = arith.constant 1.000000e+00 : f32
    %25 = vector.broadcast %cst_17 : f32 to vector<1x256xf32>
    %26 = arith.addf %25, %24 : vector<1x256xf32>
    %27 = arith.divf %25, %26 : vector<1x256xf32>
    %cst_18 = arith.constant 1.000000e+00 : f32
    %28 = vector.broadcast %cst_18 : f32 to vector<1x256xf32>
    %29 = arith.subf %28, %27 : vector<1x256xf32>
    %30 = tpu.concatenate %29, %27 in 0 : vector<1x256xf32>, vector<1x256xf32> -> vector<2x256xf32>
    %c0_19 = arith.constant 0 : index
    %c0_20 = arith.constant 0 : index
    %31 = vector.load %arg8[%c0_19, %c0_20] : memref<2x256xf32, #tpu.memory_space<vmem>>, vector<2x256xf32>
    tpu.vector_store %arg8[%c0_19, %c0_20], %30 {strides = array<i32>} : memref<2x256xf32, #tpu.memory_space<vmem>>, vector<2x256xf32>,
    return
  }
  func.func @transform_0(%arg0: i32) -> (i32, i32) {
    %c0_i32 = arith.constant 0 : i32
    %c0_i32_0 = arith.constant 0 : i32
    return %c0_i32, %arg0 : i32, i32
  }
  func.func @transform_1(%arg0: i32) -> (i32, i32) {
    %c0_i32 = arith.constant 0 : i32
    %c0_i32_0 = arith.constant 0 : i32
    %c0_i32_1 = arith.constant 0 : i32
    return %c0_i32, %c0_i32_0 : i32, i32
  }
  func.func @transform_2(%arg0: i32) -> (i32, i32) {
    %c0_i32 = arith.constant 0 : i32
    %c0_i32_0 = arith.constant 0 : i32
    %c0_i32_1 = arith.constant 0 : i32
    return %c0_i32, %c0_i32_0 : i32, i32
  }
  func.func @transform_3(%arg0: i32) -> (i32, i32) {
    %c0_i32 = arith.constant 0 : i32
    %c0_i32_0 = arith.constant 0 : i32
    %c0_i32_1 = arith.constant 0 : i32
    return %c0_i32, %c0_i32_0 : i32, i32
  }
  func.func @transform_4(%arg0: i32) -> (i32, i32) {
    %c0_i32 = arith.constant 0 : i32
    %c0_i32_0 = arith.constant 0 : i32
    %c0_i32_1 = arith.constant 0 : i32
    return %c0_i32, %c0_i32_0 : i32, i32
  }
  func.func @transform_5(%arg0: i32) -> (i32, i32) {
    %c0_i32 = arith.constant 0 : i32
    %c0_i32_0 = arith.constant 0 : i32
    %c0_i32_1 = arith.constant 0 : i32
    return %c0_i32, %c0_i32_0 : i32, i32
  }
  func.func @transform_6(%arg0: i32) -> (i32, i32) {
    %c0_i32 = arith.constant 0 : i32
    %c0_i32_0 = arith.constant 0 : i32
    %c0_i32_1 = arith.constant 0 : i32
    return %c0_i32, %c0_i32_0 : i32, i32
  }
  func.func @transform_7(%arg0: i32) -> (i32, i32) {
    %c0_i32 = arith.constant 0 : i32
    %c0_i32_0 = arith.constant 0 : i32
    return %c0_i32, %arg0 : i32, i32
  }
}

</mosaic_0001>

<llo_original>
// kernel: tpu_custom_call.1
$region0: #{tpu_custom_call.1}
  #allocation0 [shape = 'u32[]', space=smem, size = 0x4, offset = 0x4, fixed_abs, tag = 'smem constant byte address 0x4 - core index']
  #allocation1 [shape = 'u32[72,128]{1,0:T(1,128)}', space=vmem, size = 0x9000, scoped, tag = 'internal scratch']
  #allocation2 [shape = 'f32[1,1]{1,0:T(1,128)S(1)}', space=vmem, size = 0x200, scoped, tag = 'scoped memory for tpu_custom_call.1']
  %s0 = inlined_call_operand.vmem [shape: f32[4,256], index: 0, kind: input, shape index: {}]
  %s1 = inlined_call_operand.vmem [shape: bf16[128,4], index: 1, kind: input, shape index: {}]
  %s2 = inlined_call_operand.vmem [shape: f32[128,1], index: 2, kind: input, shape index: {}]
  %s3 = inlined_call_operand.vmem [shape: bf16[256,128], index: 3, kind: input, shape index: {}]
  %s4 = inlined_call_operand.vmem [shape: f32[256,1], index: 4, kind: input, shape index: {}]
  %s5 = inlined_call_operand.vmem [shape: bf16[1,256], index: 5, kind: input, shape index: {}]
  %s6 = inlined_call_operand.<no memory space> [shape: f32[1,1], index: 6, kind: input, shape index: {}]
  %s7 = inlined_call_operand.hbm [shape: f32[2,256], index: 7, kind: output, shape index: {}]
  %s8 = sld [smem:[#allocation0]]
  $region38: #{tpu_custom_call.1} parent=0
    _
  %s10 = ssub.s32 1, %s8
  %s11 = scalar_select 0, %s10, %s8
  %v12 = vstv %s6
  %13 = vst [vmem:[#allocation2] sm:$0x1] %v12
  $region1: #{tpu_custom_call.1} parent=0
    #allocation3 [shape = 'u8[2048]{0}', space=vmem, size = 0x800, scoped, tag = 'output window, operand 0, single buffered']
    #allocation4 [shape = 's32[1]{0}', space=sflag, size = 0x4, scoped, tag = 'scoped memory for tpu_custom_call.1']
    %14 = vsyncpa [#allocation4], 0
    // Predicated region
    $region2: #{tpu_custom_call.1} parent=1 // pred_check
      _
    $region3: #{tpu_custom_call.1} parent=1 // pred_check_branch
      %16 = sbr.rel (0) target = $region5
    $region4: #{tpu_custom_call.1} parent=1 // pred_region
      _
    $region5: #{tpu_custom_call.1} parent=1 // pred_fallthru
      _
    // Predicated region
    $region6: #{tpu_custom_call.1} parent=1 // pred_check
      _
    $region7: #{tpu_custom_call.1} parent=1 // pred_check_branch
      %18 = sbr.rel (0) target = $region9
    $region8: #{tpu_custom_call.1} parent=1 // pred_region
      _
    $region9: #{tpu_custom_call.1} parent=1 // pred_fallthru
      _
    // Predicated region
    $region10: #{tpu_custom_call.1} parent=1 // pred_check
      _
    $region11: #{tpu_custom_call.1} parent=1 // pred_check_branch
      %20 = sbr.rel (0) target = $region13
    $region12: #{tpu_custom_call.1} parent=1 // pred_region
      _
    $region13: #{tpu_custom_call.1} parent=1 // pred_fallthru
      _
    // Predicated region
    $region14: #{tpu_custom_call.1} parent=1 // pred_check
      _
    $region15: #{tpu_custom_call.1} parent=1 // pred_check_branch
      %22 = sbr.rel (0) target = $region17
    $region16: #{tpu_custom_call.1} parent=1 // pred_region
      _
    $region17: #{tpu_custom_call.1} parent=1 // pred_fallthru
      _
    // Predicated region
    $region18: #{tpu_custom_call.1} parent=1 // pred_check
      _
    $region19: #{tpu_custom_call.1} parent=1 // pred_check_branch
      %24 = sbr.rel (0) target = $region21
    $region20: #{tpu_custom_call.1} parent=1 // pred_region
      _
    $region21: #{tpu_custom_call.1} parent=1 // pred_fallthru
      _
    // Predicated region
    $region22: #{tpu_custom_call.1} parent=1 // pred_check
      _
    $region23: #{tpu_custom_call.1} parent=1 // pred_check_branch
      %26 = sbr.rel (0) target = $region25
    $region24: #{tpu_custom_call.1} parent=1 // pred_region
      _
    $region25: #{tpu_custom_call.1} parent=1 // pred_fallthru
      _
    // Predicated region
    $region26: #{tpu_custom_call.1} parent=1 // pred_check
      _
    $region27: #{tpu_custom_call.1} parent=1 // pred_check_branch
      %28 = sbr.rel (0) target = $region29
    $region28: #{tpu_custom_call.1} parent=1 // pred_region
      _
    $region29: #{tpu_custom_call.1} parent=1 // pred_fallthru
      _
    %v30 = vld [vmem:[%s0] sm:$0xff]
    %32 = vst [vmem:[#allocation1] ss:$2 sm:$0xff] %v30
    %v33 = vld.sshfl [vmem:[#allocation1] sm:$0xff pattern:$0x75316420]
    %v34 = vld.sshfl [vmem:[#allocation1 + $0x8] sm:$0xff pattern:$0x75316420]
    %v37 = vpack.c.bf16 %v33, %v33
    %v38 = vpack.c.bf16 %v34, %v34
    %v39 = vld [vmem:[%s1] sm:$0xf]
    %v40 = vld [vmem:[%s1 + $0x4] sm:$0xf]
    %v41 = vld [vmem:[%s1 + $0x8] sm:$0xf]
    %v42 = vld [vmem:[%s1 + $0xc] sm:$0xf]
    %v43 = vld [vmem:[%s1 + $0x10] sm:$0xf]
    %v44 = vld [vmem:[%s1 + $0x14] sm:$0xf]
    %v45 = vld [vmem:[%s1 + $0x18] sm:$0xf]
    %v46 = vld [vmem:[%s1 + $0x1c] sm:$0xf]
    %v47 = vld [vmem:[%s1 + $0x20] sm:$0xf]
    %v48 = vld [vmem:[%s1 + $0x24] sm:$0xf]
    %v49 = vld [vmem:[%s1 + $0x28] sm:$0xf]
    %v50 = vld [vmem:[%s1 + $0x2c] sm:$0xf]
    %v51 = vld [vmem:[%s1 + $0x30] sm:$0xf]
    %v52 = vld [vmem:[%s1 + $0x34] sm:$0xf]
    %v53 = vld [vmem:[%s1 + $0x38] sm:$0xf]
    %v54 = vld [vmem:[%s1 + $0x3c] sm:$0xf]
    %v55 = vld [vmem:[%s2] sm:$0xff]
    %v56 = vld [vmem:[%s2 + $0x8] sm:$0xff]
    %v57 = vld [vmem:[%s2 + $0x10] sm:$0xff]
    %v58 = vld [vmem:[%s2 + $0x18] sm:$0xff]
    %v59 = vld [vmem:[%s2 + $0x20] sm:$0xff]
    %v60 = vld [vmem:[%s2 + $0x28] sm:$0xff]
    %v61 = vld [vmem:[%s2 + $0x30] sm:$0xff]
    %v62 = vld [vmem:[%s2 + $0x38] sm:$0xff]
    %v63 = vld [vmem:[%s2 + $0x40] sm:$0xff]
    %v64 = vld [vmem:[%s2 + $0x48] sm:$0xff]
    %v65 = vld [vmem:[%s2 + $0x50] sm:$0xff]
    %v66 = vld [vmem:[%s2 + $0x58] sm:$0xff]
    %v67 = vld [vmem:[%s2 + $0x60] sm:$0xff]
    %v68 = vld [vmem:[%s2 + $0x68] sm:$0xff]
    %v69 = vld [vmem:[%s2 + $0x70] sm:$0xff]
    %v70 = vld [vmem:[%s2 + $0x78] sm:$0xff]
    %72 = vset.pattern.permute.xlu0 0
    %73 = vperm.xlu0 %72, %v55
    %v74 = vpop.permute.xlu0 %73
    %77 = vset.pattern.permute.xlu0 0
    %78 = vperm.xlu0 %77, %v56
    %v79 = vpop.permute.xlu0 %78
    %82 = vset.pattern.permute.xlu0 0
    %83 = vperm.xlu0 %82, %v57
    %v84 = vpop.permute.xlu0 %83
    %87 = vset.pattern.permute.xlu0 0
    %88 = vperm.xlu0 %87, %v58
    %v89 = vpop.permute.xlu0 %88
    %92 = vset.pattern.permute.xlu0 0
    %93 = vperm.xlu0 %92, %v59
    %v94 = vpop.permute.xlu0 %93
    %97 = vset.pattern.permute.xlu0 0
    %98 = vperm.xlu0 %97, %v60
    %v99 = vpop.permute.xlu0 %98
    %102 = vset.pattern.permute.xlu0 0
    %103 = vperm.xlu0 %102, %v61
    %v104 = vpop.permute.xlu0 %103
    %107 = vset.pattern.permute.xlu0 0
    %108 = vperm.xlu0 %107, %v62
    %v109 = vpop.permute.xlu0 %108
    %112 = vset.pattern.permute.xlu0 0
    %113 = vperm.xlu0 %112, %v63
    %v114 = vpop.permute.xlu0 %113
    %117 = vset.pattern.permute.xlu0 0
    %118 = vperm.xlu0 %117, %v64
    %v119 = vpop.permute.xlu0 %118
    %122 = vset.pattern.permute.xlu0 0
    %123 = vperm.xlu0 %122, %v65
    %v124 = vpop.permute.xlu0 %123
    %127 = vset.pattern.permute.xlu0 0
    %128 = vperm.xlu0 %127, %v66
    %v129 = vpop.permute.xlu0 %128
    %132 = vset.pattern.permute.xlu0 0
    %133 = vperm.xlu0 %132, %v67
    %v134 = vpop.permute.xlu0 %133
    %137 = vset.pattern.permute.xlu0 0
    %138 = vperm.xlu0 %137, %v68
    %v139 = vpop.permute.xlu0 %138
    %142 = vset.pattern.permute.xlu0 0
    %143 = vperm.xlu0 %142, %v69
    %v144 = vpop.permute.xlu0 %143
    %147 = vset.pattern.permute.xlu0 0
    %148 = vperm.xlu0 %147, %v70
    %v149 = vpop.permute.xlu0 %148
    %v167 = vunpack.c.l.b16 %v39
    %v168 = vunpack.c.l.b16 %v40
    %v169 = vunpack.c.l.b16 %v41
    %v170 = vunpack.c.l.b16 %v42
    %v171 = vunpack.c.l.b16 %v43
    %v172 = vunpack.c.l.b16 %v44
    %v173 = vunpack.c.l.b16 %v45
    %v174 = vunpack.c.l.b16 %v46
    %v175 = vunpack.c.l.b16 %v47
    %v176 = vunpack.c.l.b16 %v48
    %v177 = vunpack.c.l.b16 %v49
    %v178 = vunpack.c.l.b16 %v50
    %v179 = vunpack.c.l.b16 %v51
    %v180 = vunpack.c.l.b16 %v52
    %v181 = vunpack.c.l.b16 %v53
    %v182 = vunpack.c.l.b16 %v54
    %v183 = vpack.c.b16 %v168, %v167
    %v184 = vpack.c.b16 %v170, %v169
    %v185 = vpack.c.b16 %v172, %v171
    %v186 = vpack.c.b16 %v174, %v173
    %v187 = vpack.c.b16 %v176, %v175
    %v188 = vpack.c.b16 %v178, %v177
    %v189 = vpack.c.b16 %v180, %v179
    %v190 = vpack.c.b16 %v182, %v181
    %vm191 = vcmask 31744
    %v193 = vsel %vm191, %v183, 0
    %v196 = vsel %vm191, %v184, 0
    %v199 = vsel %vm191, %v185, 0
    %v202 = vsel %vm191, %v186, 0
    %v205 = vsel %vm191, %v187, 0
    %v208 = vsel %vm191, %v188, 0
    %v211 = vsel %vm191, %v189, 0
    %v214 = vsel %vm191, %v190, 0
    %vm216 = vcmask 1041408
    %v218 = vsel %vm216, %v37, 0
    %v221 = vsel %vm216, %v38, 0
    %223 = vmatpush.bf16.msra.mxu0 0
    %224 = vmatpush.bf16.msra.mxu0 0
    %225 = vmatpush.bf16.msra.mxu0 0
    %226 = vmatpush.bf16.msra.mxu0 0
    %227 = vmatpush.bf16.msra.mxu0 0
    %228 = vmatpush.bf16.msra.mxu0 0
    %229 = vmatpush.bf16.msra.mxu0 0
    %230 = vmatpush.bf16.msra.mxu0 %v218
    %231 = vmatmul.bf16.gmra.mxu0 %v193
    %v232 = vpop.f32.mrf.mxu0
    %v233 = vadd.f32 %v74, %v232
    %v234 = vpop.f32.mrf.mxu0
    %v235 = vadd.f32 %v79, %v234
    %236 = vmatmul.bf16.gmra.mxu0 %v196
    %v237 = vpop.f32.mrf.mxu0
    %v238 = vadd.f32 %v84, %v237
    %v239 = vpop.f32.mrf.mxu0
    %v240 = vadd.f32 %v89, %v239
    %241 = vmatmul.bf16.gmra.mxu0 %v199
    %v242 = vpop.f32.mrf.mxu0
    %v243 = vadd.f32 %v94, %v242
    %v244 = vpop.f32.mrf.mxu0
    %v245 = vadd.f32 %v99, %v244
    %246 = vmatmul.bf16.gmra.mxu0 %v202
    %v247 = vpop.f32.mrf.mxu0
    %v248 = vadd.f32 %v104, %v247
    %v249 = vpop.f32.mrf.mxu0
    %v250 = vadd.f32 %v109, %v249
    %251 = vmatmul.bf16.gmra.mxu0 %v205
    %v252 = vpop.f32.mrf.mxu0
    %v253 = vadd.f32 %v114, %v252
    %v254 = vpop.f32.mrf.mxu0
    %v255 = vadd.f32 %v119, %v254
    %256 = vmatmul.bf16.gmra.mxu0 %v208
    %v257 = vpop.f32.mrf.mxu0
    %v258 = vadd.f32 %v124, %v257
    %v259 = vpop.f32.mrf.mxu0
    %v260 = vadd.f32 %v129, %v259
    %261 = vmatmul.bf16.gmra.mxu0 %v211
    %v262 = vpop.f32.mrf.mxu0
    %v263 = vadd.f32 %v134, %v262
    %v264 = vpop.f32.mrf.mxu0
    %v265 = vadd.f32 %v139, %v264
    %266 = vmatmul.bf16.gmra.mxu0 %v214
    %v267 = vpop.f32.mrf.mxu0
    %v268 = vadd.f32 %v144, %v267
    %v269 = vpop.f32.mrf.mxu0
    %v270 = vadd.f32 %v149, %v269
    %271 = vdwg.mxu0
    %272 = vmatpush.bf16.msra.mxu0 0
    %273 = vmatpush.bf16.msra.mxu0 0
    %274 = vmatpush.bf16.msra.mxu0 0
    %275 = vmatpush.bf16.msra.mxu0 0
    %276 = vmatpush.bf16.msra.mxu0 0
    %277 = vmatpush.bf16.msra.mxu0 0
    %278 = vmatpush.bf16.msra.mxu0 0
    %279 = vmatpush.bf16.msra.mxu0 %v221
    %280 = vmatmul.bf16.gmra.mxu0 %v193
    %v281 = vpop.f32.mrf.mxu0
    %v282 = vadd.f32 %v74, %v281
    %v283 = vpop.f32.mrf.mxu0
    %v284 = vadd.f32 %v79, %v283
    %285 = vmatmul.bf16.gmra.mxu0 %v196
    %v286 = vpop.f32.mrf.mxu0
    %v287 = vadd.f32 %v84, %v286
    %v288 = vpop.f32.mrf.mxu0
    %v289 = vadd.f32 %v89, %v288
    %290 = vmatmul.bf16.gmra.mxu0 %v199
    %v291 = vpop.f32.mrf.mxu0
    %v292 = vadd.f32 %v94, %v291
    %v293 = vpop.f32.mrf.mxu0
    %v294 = vadd.f32 %v99, %v293
    %295 = vmatmul.bf16.gmra.mxu0 %v202
    %v296 = vpop.f32.mrf.mxu0
    %v297 = vadd.f32 %v104, %v296
    %v298 = vpop.f32.mrf.mxu0
    %v299 = vadd.f32 %v109, %v298
    %300 = vmatmul.bf16.gmra.mxu0 %v205
    %v301 = vpop.f32.mrf.mxu0
    %v302 = vadd.f32 %v114, %v301
    %v303 = vpop.f32.mrf.mxu0
    %v304 = vadd.f32 %v119, %v303
    %305 = vmatmul.bf16.gmra.mxu0 %v208
    %v306 = vpop.f32.mrf.mxu0
    %v307 = vadd.f32 %v124, %v306
    %v308 = vpop.f32.mrf.mxu0
    %v309 = vadd.f32 %v129, %v308
    %310 = vmatmul.bf16.gmra.mxu0 %v211
    %v311 = vpop.f32.mrf.mxu0
    %v312 = vadd.f32 %v134, %v311
    %v313 = vpop.f32.mrf.mxu0
    %v314 = vadd.f32 %v139, %v313
    %315 = vmatmul.bf16.gmra.mxu0 %v214
    %v316 = vpop.f32.mrf.mxu0
    %v317 = vadd.f32 %v144, %v316
    %v318 = vpop.f32.mrf.mxu0
    %v319 = vadd.f32 %v149, %v318
    %320 = vdwg.mxu0
    %v321 = vmax.f32 %v233, 0.0
    %v322 = vmax.f32 %v282, 0.0
    %v323 = vmax.f32 %v235, 0.0
    %v324 = vmax.f32 %v284, 0.0
    %v325 = vmax.f32 %v238, 0.0
    %v326 = vmax.f32 %v287, 0.0
    %v327 = vmax.f32 %v240, 0.0
    %v328 = vmax.f32 %v289, 0.0
    %v329 = vmax.f32 %v243, 0.0
    %v330 = vmax.f32 %v292, 0.0
    %v331 = vmax.f32 %v245, 0.0
    %v332 = vmax.f32 %v294, 0.0
    %v333 = vmax.f32 %v248, 0.0
    %v334 = vmax.f32 %v297, 0.0
    %v335 = vmax.f32 %v250, 0.0
    %v336 = vmax.f32 %v299, 0.0
    %v337 = vmax.f32 %v253, 0.0
    %v338 = vmax.f32 %v302, 0.0
    %v339 = vmax.f32 %v255, 0.0
    %v340 = vmax.f32 %v304, 0.0
    %v341 = vmax.f32 %v258, 0.0
    %v342 = vmax.f32 %v307, 0.0
    %v343 = vmax.f32 %v260, 0.0
    %v344 = vmax.f32 %v309, 0.0
    %v345 = vmax.f32 %v263, 0.0
    %v346 = vmax.f32 %v312, 0.0
    %v347 = vmax.f32 %v265, 0.0
    %v348 = vmax.f32 %v314, 0.0
    %v349 = vmax.f32 %v268, 0.0
    %v350 = vmax.f32 %v317, 0.0
    %v351 = vmax.f32 %v270, 0.0
    %v352 = vmax.f32 %v319, 0.0
    %v353 = vld [vmem:[%s3] sm:$0xf]
    %v354 = vld [vmem:[%s3 + $0x4] sm:$0xf]
    %v355 = vld [vmem:[%s3 + $0x8] sm:$0xf]
    %v356 = vld [vmem:[%s3 + $0xc] sm:$0xf]
    %v357 = vld [vmem:[%s3 + $0x10] sm:$0xf]
    %v358 = vld [vmem:[%s3 + $0x14] sm:$0xf]
    %v359 = vld [vmem:[%s3 + $0x18] sm:$0xf]
    %v360 = vld [vmem:[%s3 + $0x1c] sm:$0xf]
    %v361 = vld [vmem:[%s3 + $0x20] sm:$0xf]
    %v362 = vld [vmem:[%s3 + $0x24] sm:$0xf]
    %v363 = vld [vmem:[%s3 + $0x28] sm:$0xf]
    %v364 = vld [vmem:[%s3 + $0x2c] sm:$0xf]
    %v365 = vld [vmem:[%s3 + $0x30] sm:$0xf]
    %v366 = vld [vmem:[%s3 + $0x34] sm:$0xf]
    %v367 = vld [vmem:[%s3 + $0x38] sm:$0xf]
    %v368 = vld [vmem:[%s3 + $0x3c] sm:$0xf]
    %v369 = vld [vmem:[%s3 + $0x40] sm:$0xf]
    %v370 = vld [vmem:[%s3 + $0x44] sm:$0xf]
    %v371 = vld [vmem:[%s3 + $0x48] sm:$0xf]
    %v372 = vld [vmem:[%s3 + $0x4c] sm:$0xf]
    %v373 = vld [vmem:[%s3 + $0x50] sm:$0xf]
    %v374 = vld [vmem:[%s3 + $0x54] sm:$0xf]
    %v375 = vld [vmem:[%s3 + $0x58] sm:$0xf]
    %v376 = vld [vmem:[%s3 + $0x5c] sm:$0xf]
    %v377 = vld [vmem:[%s3 + $0x60] sm:$0xf]
    %v378 = vld [vmem:[%s3 + $0x64] sm:$0xf]
    %v379 = vld [vmem:[%s3 + $0x68] sm:$0xf]
    %v380 = vld [vmem:[%s3 + $0x6c] sm:$0xf]
    %v381 = vld [vmem:[%s3 + $0x70] sm:$0xf]
    %v382 = vld [vmem:[%s3 + $0x74] sm:$0xf]
    %v383 = vld [vmem:[%s3 + $0x78] sm:$0xf]
    %v384 = vld [vmem:[%s3 + $0x7c] sm:$0xf]
    %v385 = vpack.c.bf16 %v323, %v321
    %v386 = vpack.c.bf16 %v324, %v322
    %v387 = vpack.c.bf16 %v327, %v325
    %v388 = vpack.c.bf16 %v328, %v326
    %v389 = vpack.c.bf16 %v331, %v329
    %v390 = vpack.c.bf16 %v332, %v330
    %v391 = vpack.c.bf16 %v335, %v333
    %v392 = vpack.c.bf16 %v336, %v334
    %v393 = vpack.c.bf16 %v339, %v337
    %v394 = vpack.c.bf16 %v340, %v338
    %v395 = vpack.c.bf16 %v343, %v341
    %v396 = vpack.c.bf16 %v344, %v342
    %v397 = vpack.c.bf16 %v347, %v345
    %v398 = vpack.c.bf16 %v348, %v346
    %v399 = vpack.c.bf16 %v351, %v349
    %v400 = vpack.c.bf16 %v352, %v350
    %v401 = vld [vmem:[%s4] sm:$0xff]
    %v402 = vld [vmem:[%s4 + $0x8] sm:$0xff]
    %v403 = vld [vmem:[%s4 + $0x10] sm:$0xff]
    %v404 = vld [vmem:[%s4 + $0x18] sm:$0xff]
    %v405 = vld [vmem:[%s4 + $0x20] sm:$0xff]
    %v406 = vld [vmem:[%s4 + $0x28] sm:$0xff]
    %v407 = vld [vmem:[%s4 + $0x30] sm:$0xff]
    %v408 = vld [vmem:[%s4 + $0x38] sm:$0xff]
    %v409 = vld [vmem:[%s4 + $0x40] sm:$0xff]
    %v410 = vld [vmem:[%s4 + $0x48] sm:$0xff]
    %v411 = vld [vmem:[%s4 + $0x50] sm:$0xff]
    %v412 = vld [vmem:[%s4 + $0x58] sm:$0xff]
    %v413 = vld [vmem:[%s4 + $0x60] sm:$0xff]
    %v414 = vld [vmem:[%s4 + $0x68] sm:$0xff]
    %v415 = vld [vmem:[%s4 + $0x70] sm:$0xff]
    %v416 = vld [vmem:[%s4 + $0x78] sm:$0xff]
    %v417 = vld [vmem:[%s4 + $0x80] sm:$0xff]
    %v418 = vld [vmem:[%s4 + $0x88] sm:$0xff]
    %v419 = vld [vmem:[%s4 + $0x90] sm:$0xff]
    %v420 = vld [vmem:[%s4 + $0x98] sm:$0xff]
    %v421 = vld [vmem:[%s4 + $0xa0] sm:$0xff]
    %v422 = vld [vmem:[%s4 + $0xa8] sm:$0xff]
    %v423 = vld [vmem:[%s4 + $0xb0] sm:$0xff]
    %v424 = vld [vmem:[%s4 + $0xb8] sm:$0xff]
    %v425 = vld [vmem:[%s4 + $0xc0] sm:$0xff]
    %v426 = vld [vmem:[%s4 + $0xc8] sm:$0xff]
    %v427 = vld [vmem:[%s4 + $0xd0] sm:$0xff]
    %v428 = vld [vmem:[%s4 + $0xd8] sm:$0xff]
    %v429 = vld [vmem:[%s4 + $0xe0] sm:$0xff]
    %v430 = vld [vmem:[%s4 + $0xe8] sm:$0xff]
    %v431 = vld [vmem:[%s4 + $0xf0] sm:$0xff]
    %v432 = vld [vmem:[%s4 + $0xf8] sm:$0xff]
    %434 = vset.pattern.permute.xlu0 0
    %435 = vperm.xlu0 %434, %v401
    %v436 = vpop.permute.xlu0 %435
    %439 = vset.pattern.permute.xlu0 0
    %440 = vperm.xlu0 %439, %v402
    %v441 = vpop.permute.xlu0 %440
    %444 = vset.pattern.permute.xlu0 0
    %445 = vperm.xlu0 %444, %v403
    %v446 = vpop.permute.xlu0 %445
    %449 = vset.pattern.permute.xlu0 0
    %450 = vperm.xlu0 %449, %v404
    %v451 = vpop.permute.xlu0 %450
    %454 = vset.pattern.permute.xlu0 0
    %455 = vperm.xlu0 %454, %v405
    %v456 = vpop.permute.xlu0 %455
    %459 = vset.pattern.permute.xlu0 0
    %460 = vperm.xlu0 %459, %v406
    %v461 = vpop.permute.xlu0 %460
    %464 = vset.pattern.permute.xlu0 0
    %465 = vperm.xlu0 %464, %v407
    %v466 = vpop.permute.xlu0 %465
    %469 = vset.pattern.permute.xlu0 0
    %470 = vperm.xlu0 %469, %v408
    %v471 = vpop.permute.xlu0 %470
    %474 = vset.pattern.permute.xlu0 0
    %475 = vperm.xlu0 %474, %v409
    %v476 = vpop.permute.xlu0 %475
    %479 = vset.pattern.permute.xlu0 0
    %480 = vperm.xlu0 %479, %v410
    %v481 = vpop.permute.xlu0 %480
    %484 = vset.pattern.permute.xlu0 0
    %485 = vperm.xlu0 %484, %v411
    %v486 = vpop.permute.xlu0 %485
    %489 = vset.pattern.permute.xlu0 0
    %490 = vperm.xlu0 %489, %v412
    %v491 = vpop.permute.xlu0 %490
    %494 = vset.pattern.permute.xlu0 0
    %495 = vperm.xlu0 %494, %v413
    %v496 = vpop.permute.xlu0 %495
    %499 = vset.pattern.permute.xlu0 0
    %500 = vperm.xlu0 %499, %v414
    %v501 = vpop.permute.xlu0 %500
    %504 = vset.pattern.permute.xlu0 0
    %505 = vperm.xlu0 %504, %v415
    %v506 = vpop.permute.xlu0 %505
    %509 = vset.pattern.permute.xlu0 0
    %510 = vperm.xlu0 %509, %v416
    %v511 = vpop.permute.xlu0 %510
    %514 = vset.pattern.permute.xlu0 0
    %515 = vperm.xlu0 %514, %v417
    %v516 = vpop.permute.xlu0 %515
    %519 = vset.pattern.permute.xlu0 0
    %520 = vperm.xlu0 %519, %v418
    %v521 = vpop.permute.xlu0 %520
    %524 = vset.pattern.permute.xlu0 0
    %525 = vperm.xlu0 %524, %v419
    %v526 = vpop.permute.xlu0 %525
    %529 = vset.pattern.permute.xlu0 0
    %530 = vperm.xlu0 %529, %v420
    %v531 = vpop.permute.xlu0 %530
    %534 = vset.pattern.permute.xlu0 0
    %535 = vperm.xlu0 %534, %v421
    %v536 = vpop.permute.xlu0 %535
    %539 = vset.pattern.permute.xlu0 0
    %540 = vperm.xlu0 %539, %v422
    %v541 = vpop.permute.xlu0 %540
    %544 = vset.pattern.permute.xlu0 0
    %545 = vperm.xlu0 %544, %v423
    %v546 = vpop.permute.xlu0 %545
    %549 = vset.pattern.permute.xlu0 0
    %550 = vperm.xlu0 %549, %v424
    %v551 = vpop.permute.xlu0 %550
    %554 = vset.pattern.permute.xlu0 0
    %555 = vperm.xlu0 %554, %v425
    %v556 = vpop.permute.xlu0 %555
    %559 = vset.pattern.permute.xlu0 0
    %560 = vperm.xlu0 %559, %v426
    %v561 = vpop.permute.xlu0 %560
    %564 = vset.pattern.permute.xlu0 0
    %565 = vperm.xlu0 %564, %v427
    %v566 = vpop.permute.xlu0 %565
    %569 = vset.pattern.permute.xlu0 0
    %570 = vperm.xlu0 %569, %v428
    %v571 = vpop.permute.xlu0 %570
    %574 = vset.pattern.permute.xlu0 0
    %575 = vperm.xlu0 %574, %v429
    %v576 = vpop.permute.xlu0 %575
    %579 = vset.pattern.permute.xlu0 0
    %580 = vperm.xlu0 %579, %v430
    %v581 = vpop.permute.xlu0 %580
    %584 = vset.pattern.permute.xlu0 0
    %585 = vperm.xlu0 %584, %v431
    %v586 = vpop.permute.xlu0 %585
    %589 = vset.pattern.permute.xlu0 0
    %590 = vperm.xlu0 %589, %v432
    %v591 = vpop.permute.xlu0 %590
    %v625 = vunpack.c.l.b16 %v353
    %v626 = vunpack.c.l.b16 %v354
    %v627 = vunpack.c.l.b16 %v355
    %v628 = vunpack.c.l.b16 %v356
    %v629 = vunpack.c.l.b16 %v357
    %v630 = vunpack.c.l.b16 %v358
    %v631 = vunpack.c.l.b16 %v359
    %v632 = vunpack.c.l.b16 %v360
    %v633 = vunpack.c.l.b16 %v361
    %v634 = vunpack.c.l.b16 %v362
    %v635 = vunpack.c.l.b16 %v363
    %v636 = vunpack.c.l.b16 %v364
    %v637 = vunpack.c.l.b16 %v365
    %v638 = vunpack.c.l.b16 %v366
    %v639 = vunpack.c.l.b16 %v367
    %v640 = vunpack.c.l.b16 %v368
    %v641 = vunpack.c.l.b16 %v369
    %v642 = vunpack.c.l.b16 %v370
    %v643 = vunpack.c.l.b16 %v371
    %v644 = vunpack.c.l.b16 %v372
    %v645 = vunpack.c.l.b16 %v373
    %v646 = vunpack.c.l.b16 %v374
    %v647 = vunpack.c.l.b16 %v375
    %v648 = vunpack.c.l.b16 %v376
    %v649 = vunpack.c.l.b16 %v377
    %v650 = vunpack.c.l.b16 %v378
    %v651 = vunpack.c.l.b16 %v379
    %v652 = vunpack.c.l.b16 %v380
    %v653 = vunpack.c.l.b16 %v381
    %v654 = vunpack.c.l.b16 %v382
    %v655 = vunpack.c.l.b16 %v383
    %v656 = vunpack.c.l.b16 %v384
    %v657 = vpack.c.b16 %v626, %v625
    %v658 = vpack.c.b16 %v628, %v627
    %v659 = vpack.c.b16 %v630, %v629
    %v660 = vpack.c.b16 %v632, %v631
    %v661 = vpack.c.b16 %v634, %v633
    %v662 = vpack.c.b16 %v636, %v635
    %v663 = vpack.c.b16 %v638, %v637
    %v664 = vpack.c.b16 %v640, %v639
    %v665 = vpack.c.b16 %v642, %v641
    %v666 = vpack.c.b16 %v644, %v643
    %v667 = vpack.c.b16 %v646, %v645
    %v668 = vpack.c.b16 %v648, %v647
    %v669 = vpack.c.b16 %v650, %v649
    %v670 = vpack.c.b16 %v652, %v651
    %v671 = vpack.c.b16 %v654, %v653
    %v672 = vpack.c.b16 %v656, %v655
    %689 = vmatpush.bf16.msra.mxu0 %v399
    %690 = vmatpush.bf16.msra.mxu0 %v397
    %691 = vmatpush.bf16.msra.mxu0 %v395
    %692 = vmatpush.bf16.msra.mxu0 %v393
    %693 = vmatpush.bf16.msra.mxu0 %v391
    %694 = vmatpush.bf16.msra.mxu0 %v389
    %695 = vmatpush.bf16.msra.mxu0 %v387
    %696 = vmatpush.bf16.msra.mxu0 %v385
    %697 = vmatmul.bf16.gmra.mxu0 %v657
    %v698 = vpop.f32.mrf.mxu0
    %v699 = vadd.f32 %v436, %v698
    %v700 = vpop.f32.mrf.mxu0
    %v701 = vadd.f32 %v441, %v700
    %702 = vmatmul.bf16.gmra.mxu0 %v658
    %v703 = vpop.f32.mrf.mxu0
    %v704 = vadd.f32 %v446, %v703
    %v705 = vpop.f32.mrf.mxu0
    %v706 = vadd.f32 %v451, %v705
    %707 = vmatmul.bf16.gmra.mxu0 %v659
    %v708 = vpop.f32.mrf.mxu0
    %v709 = vadd.f32 %v456, %v708
    %v710 = vpop.f32.mrf.mxu0
    %v711 = vadd.f32 %v461, %v710
    %712 = vmatmul.bf16.gmra.mxu0 %v660
    %v713 = vpop.f32.mrf.mxu0
    %v714 = vadd.f32 %v466, %v713
    %v715 = vpop.f32.mrf.mxu0
    %v716 = vadd.f32 %v471, %v715
    %717 = vmatmul.bf16.gmra.mxu0 %v661
    %v718 = vpop.f32.mrf.mxu0
    %v719 = vadd.f32 %v476, %v718
    %v720 = vpop.f32.mrf.mxu0
    %v721 = vadd.f32 %v481, %v720
    %722 = vmatmul.bf16.gmra.mxu0 %v662
    %v723 = vpop.f32.mrf.mxu0
    %v724 = vadd.f32 %v486, %v723
    %v725 = vpop.f32.mrf.mxu0
    %v726 = vadd.f32 %v491, %v725
    %727 = vmatmul.bf16.gmra.mxu0 %v663
    %v728 = vpop.f32.mrf.mxu0
    %v729 = vadd.f32 %v496, %v728
    %v730 = vpop.f32.mrf.mxu0
    %v731 = vadd.f32 %v501, %v730
    %732 = vmatmul.bf16.gmra.mxu0 %v664
    %v733 = vpop.f32.mrf.mxu0
    %v734 = vadd.f32 %v506, %v733
    %v735 = vpop.f32.mrf.mxu0
    %v736 = vadd.f32 %v511, %v735
    %737 = vmatmul.bf16.gmra.mxu0 %v665
    %v738 = vpop.f32.mrf.mxu0
    %v739 = vadd.f32 %v516, %v738
    %v740 = vpop.f32.mrf.mxu0
    %v741 = vadd.f32 %v521, %v740
    %742 = vmatmul.bf16.gmra.mxu0 %v666
    %v743 = vpop.f32.mrf.mxu0
    %v744 = vadd.f32 %v526, %v743
    %v745 = vpop.f32.mrf.mxu0
    %v746 = vadd.f32 %v531, %v745
    %747 = vmatmul.bf16.gmra.mxu0 %v667
    %v748 = vpop.f32.mrf.mxu0
    %v749 = vadd.f32 %v536, %v748
    %v750 = vpop.f32.mrf.mxu0
    %v751 = vadd.f32 %v541, %v750
    %752 = vmatmul.bf16.gmra.mxu0 %v668
    %v753 = vpop.f32.mrf.mxu0
    %v754 = vadd.f32 %v546, %v753
    %v755 = vpop.f32.mrf.mxu0
    %v756 = vadd.f32 %v551, %v755
    %757 = vmatmul.bf16.gmra.mxu0 %v669
    %v758 = vpop.f32.mrf.mxu0
    %v759 = vadd.f32 %v556, %v758
    %v760 = vpop.f32.mrf.mxu0
    %v761 = vadd.f32 %v561, %v760
    %762 = vmatmul.bf16.gmra.mxu0 %v670
    %v763 = vpop.f32.mrf.mxu0
    %v764 = vadd.f32 %v566, %v763
    %v765 = vpop.f32.mrf.mxu0
    %v766 = vadd.f32 %v571, %v765
    %767 = vmatmul.bf16.gmra.mxu0 %v671
    %v768 = vpop.f32.mrf.mxu0
    %v769 = vadd.f32 %v576, %v768
    %v770 = vpop.f32.mrf.mxu0
    %v771 = vadd.f32 %v581, %v770
    %772 = vmatmul.bf16.gmra.mxu0 %v672
    %v773 = vpop.f32.mrf.mxu0
    %v774 = vadd.f32 %v586, %v773
    %v775 = vpop.f32.mrf.mxu0
    %v776 = vadd.f32 %v591, %v775
    %777 = vdwg.mxu0
    %778 = vmatpush.bf16.msra.mxu0 %v400
    %779 = vmatpush.bf16.msra.mxu0 %v398
    %780 = vmatpush.bf16.msra.mxu0 %v396
    %781 = vmatpush.bf16.msra.mxu0 %v394
    %782 = vmatpush.bf16.msra.mxu0 %v392
    %783 = vmatpush.bf16.msra.mxu0 %v390
    %784 = vmatpush.bf16.msra.mxu0 %v388
    %785 = vmatpush.bf16.msra.mxu0 %v386
    %786 = vmatmul.bf16.gmra.mxu0 %v657
    %v787 = vpop.f32.mrf.mxu0
    %v788 = vadd.f32 %v436, %v787
    %v789 = vpop.f32.mrf.mxu0
    %v790 = vadd.f32 %v441, %v789
    %791 = vmatmul.bf16.gmra.mxu0 %v658
    %v792 = vpop.f32.mrf.mxu0
    %v793 = vadd.f32 %v446, %v792
    %v794 = vpop.f32.mrf.mxu0
    %v795 = vadd.f32 %v451, %v794
    %796 = vmatmul.bf16.gmra.mxu0 %v659
    %v797 = vpop.f32.mrf.mxu0
    %v798 = vadd.f32 %v456, %v797
    %v799 = vpop.f32.mrf.mxu0
    %v800 = vadd.f32 %v461, %v799
    %801 = vmatmul.bf16.gmra.mxu0 %v660
    %v802 = vpop.f32.mrf.mxu0
    %v803 = vadd.f32 %v466, %v802
    %v804 = vpop.f32.mrf.mxu0
    %v805 = vadd.f32 %v471, %v804
    %806 = vmatmul.bf16.gmra.mxu0 %v661
    %v807 = vpop.f32.mrf.mxu0
    %v808 = vadd.f32 %v476, %v807
    %v809 = vpop.f32.mrf.mxu0
    %v810 = vadd.f32 %v481, %v809
    %811 = vmatmul.bf16.gmra.mxu0 %v662
    %v812 = vpop.f32.mrf.mxu0
    %v813 = vadd.f32 %v486, %v812
    %v814 = vpop.f32.mrf.mxu0
    %v815 = vadd.f32 %v491, %v814
    %816 = vmatmul.bf16.gmra.mxu0 %v663
    %v817 = vpop.f32.mrf.mxu0
    %v818 = vadd.f32 %v496, %v817
    %v819 = vpop.f32.mrf.mxu0
    %v820 = vadd.f32 %v501, %v819
    %821 = vmatmul.bf16.gmra.mxu0 %v664
    %v822 = vpop.f32.mrf.mxu0
    %v823 = vadd.f32 %v506, %v822
    %v824 = vpop.f32.mrf.mxu0
    %v825 = vadd.f32 %v511, %v824
    %826 = vmatmul.bf16.gmra.mxu0 %v665
    %v827 = vpop.f32.mrf.mxu0
    %v828 = vadd.f32 %v516, %v827
    %v829 = vpop.f32.mrf.mxu0
    %v830 = vadd.f32 %v521, %v829
    %831 = vmatmul.bf16.gmra.mxu0 %v666
    %v832 = vpop.f32.mrf.mxu0
    %v833 = vadd.f32 %v526, %v832
    %v834 = vpop.f32.mrf.mxu0
    %v835 = vadd.f32 %v531, %v834
    %836 = vmatmul.bf16.gmra.mxu0 %v667
    %v837 = vpop.f32.mrf.mxu0
    %v838 = vadd.f32 %v536, %v837
    %v839 = vpop.f32.mrf.mxu0
    %v840 = vadd.f32 %v541, %v839
    %841 = vmatmul.bf16.gmra.mxu0 %v668
    %v842 = vpop.f32.mrf.mxu0
    %v843 = vadd.f32 %v546, %v842
    %v844 = vpop.f32.mrf.mxu0
    %v845 = vadd.f32 %v551, %v844
    %846 = vmatmul.bf16.gmra.mxu0 %v669
    %v847 = vpop.f32.mrf.mxu0
    %v848 = vadd.f32 %v556, %v847
    %v849 = vpop.f32.mrf.mxu0
    %v850 = vadd.f32 %v561, %v849
    %851 = vmatmul.bf16.gmra.mxu0 %v670
    %v852 = vpop.f32.mrf.mxu0
    %v853 = vadd.f32 %v566, %v852
    %v854 = vpop.f32.mrf.mxu0
    %v855 = vadd.f32 %v571, %v854
    %856 = vmatmul.bf16.gmra.mxu0 %v671
    %v857 = vpop.f32.mrf.mxu0
    %v858 = vadd.f32 %v576, %v857
    %v859 = vpop.f32.mrf.mxu0
    %v860 = vadd.f32 %v581, %v859
    %861 = vmatmul.bf16.gmra.mxu0 %v672
    %v862 = vpop.f32.mrf.mxu0
    %v863 = vadd.f32 %v586, %v862
    %v864 = vpop.f32.mrf.mxu0
    %v865 = vadd.f32 %v591, %v864
    %866 = vdwg.mxu0
    %v867 = vmax.f32 %v699, 0.0
    %v868 = vmax.f32 %v788, 0.0
    %v869 = vmax.f32 %v701, 0.0
    %v870 = vmax.f32 %v790, 0.0
    %v871 = vmax.f32 %v704, 0.0
    %v872 = vmax.f32 %v793, 0.0
    %v873 = vmax.f32 %v706, 0.0
    %v874 = vmax.f32 %v795, 0.0
    %v875 = vmax.f32 %v709, 0.0
    %v876 = vmax.f32 %v798, 0.0
    %v877 = vmax.f32 %v711, 0.0
    %v878 = vmax.f32 %v800, 0.0
    %v879 = vmax.f32 %v714, 0.0
    %v880 = vmax.f32 %v803, 0.0
    %v881 = vmax.f32 %v716, 0.0
    %v882 = vmax.f32 %v805, 0.0
    %v883 = vmax.f32 %v719, 0.0
    %v884 = vmax.f32 %v808, 0.0
    %v885 = vmax.f32 %v721, 0.0
    %v886 = vmax.f32 %v810, 0.0
    %v887 = vmax.f32 %v724, 0.0
    %v888 = vmax.f32 %v813, 0.0
    %v889 = vmax.f32 %v726, 0.0
    %v890 = vmax.f32 %v815, 0.0
    %v891 = vmax.f32 %v729, 0.0
    %v892 = vmax.f32 %v818, 0.0
    %v893 = vmax.f32 %v731, 0.0
    %v894 = vmax.f32 %v820, 0.0
    %v895 = vmax.f32 %v734, 0.0
    %v896 = vmax.f32 %v823, 0.0
    %v897 = vmax.f32 %v736, 0.0
    %v898 = vmax.f32 %v825, 0.0
    %v899 = vmax.f32 %v739, 0.0
    %v900 = vmax.f32 %v828, 0.0
    %v901 = vmax.f32 %v741, 0.0
    %v902 = vmax.f32 %v830, 0.0
    %v903 = vmax.f32 %v744, 0.0
    %v904 = vmax.f32 %v833, 0.0
    %v905 = vmax.f32 %v746, 0.0
    %v906 = vmax.f32 %v835, 0.0
    %v907 = vmax.f32 %v749, 0.0
    %v908 = vmax.f32 %v838, 0.0
    %v909 = vmax.f32 %v751, 0.0
    %v910 = vmax.f32 %v840, 0.0
    %v911 = vmax.f32 %v754, 0.0
    %v912 = vmax.f32 %v843, 0.0
    %v913 = vmax.f32 %v756, 0.0
    %v914 = vmax.f32 %v845, 0.0
    %v915 = vmax.f32 %v759, 0.0
    %v916 = vmax.f32 %v848, 0.0
    %v917 = vmax.f32 %v761, 0.0
    %v918 = vmax.f32 %v850, 0.0
    %v919 = vmax.f32 %v764, 0.0
    %v920 = vmax.f32 %v853, 0.0
    %v921 = vmax.f32 %v766, 0.0
    %v922 = vmax.f32 %v855, 0.0
    %v923 = vmax.f32 %v769, 0.0
    %v924 = vmax.f32 %v858, 0.0
    %v925 = vmax.f32 %v771, 0.0
    %v926 = vmax.f32 %v860, 0.0
    %v927 = vmax.f32 %v774, 0.0
    %v928 = vmax.f32 %v863, 0.0
    %v929 = vmax.f32 %v776, 0.0
    %v930 = vmax.f32 %v865, 0.0
    %v931 = vpack.c.bf16 %v869, %v867
    %v932 = vpack.c.bf16 %v870, %v868
    %v933 = vpack.c.bf16 %v873, %v871
    %v934 = vpack.c.bf16 %v874, %v872
    %v935 = vpack.c.bf16 %v877, %v875
    %v936 = vpack.c.bf16 %v878, %v876
    %v937 = vpack.c.bf16 %v881, %v879
    %v938 = vpack.c.bf16 %v882, %v880
    %v939 = vpack.c.bf16 %v885, %v883
    %v940 = vpack.c.bf16 %v886, %v884
    %v941 = vpack.c.bf16 %v889, %v887
    %v942 = vpack.c.bf16 %v890, %v888
    %v943 = vpack.c.bf16 %v893, %v891
    %v944 = vpack.c.bf16 %v894, %v892
    %v945 = vpack.c.bf16 %v897, %v895
    %v946 = vpack.c.bf16 %v898, %v896
    %v947 = vpack.c.bf16 %v901, %v899
    %v948 = vpack.c.bf16 %v902, %v900
    %v949 = vpack.c.bf16 %v905, %v903
    %v950 = vpack.c.bf16 %v906, %v904
    %v951 = vpack.c.bf16 %v909, %v907
    %v952 = vpack.c.bf16 %v910, %v908
    %v953 = vpack.c.bf16 %v913, %v911
    %v954 = vpack.c.bf16 %v914, %v912
    %v955 = vpack.c.bf16 %v917, %v915
    %v956 = vpack.c.bf16 %v918, %v916
    %v957 = vpack.c.bf16 %v921, %v919
    %v958 = vpack.c.bf16 %v922, %v920
    %v959 = vpack.c.bf16 %v925, %v923
    %v960 = vpack.c.bf16 %v926, %v924
    %v961 = vpack.c.bf16 %v929, %v927
    %v962 = vpack.c.bf16 %v930, %v928
    %v963 = vld [vmem:[%s5] sm:$0x3]
    %v964 = vld [vmem:[#allocation2] sm:$0x1]
    %966 = vset.pattern.permute.xlu0 0
    %967 = vperm.xlu0 %966, %v964
    %v968 = vpop.permute.xlu0 %967
    %v970 = vperm.slane %v968, 0
    %972 = vst [vmem:[#allocation1] ss:$9 sm:$0xff] %v963
    %v973 = vld [vmem:[#allocation1] sm:$0xff]
    %v974 = vld [vmem:[#allocation1 + $0x9] sm:$0xff]
    %977 = vmatpush.bf16.msra.mxu0 %v945
    %978 = vmatpush.bf16.msra.mxu0 %v943
    %979 = vmatpush.bf16.msra.mxu0 %v941
    %980 = vmatpush.bf16.msra.mxu0 %v939
    %981 = vmatpush.bf16.msra.mxu0 %v937
    %982 = vmatpush.bf16.msra.mxu0 %v935
    %983 = vmatpush.bf16.msra.mxu0 %v933
    %984 = vmatpush.bf16.msra.mxu0 %v931
    %985 = vmatmul.bf16.gmra.mxu0 %v973
    %v986 = vpop.f32.mrf.mxu0
    %v987 = vadd.f32 %v970, %v986
    %v988 = vpop.f32.mrf.mxu0
    %989 = vdwg.mxu0
    %990 = vmatpush.bf16.msra.mxu0 %v961
    %991 = vmatpush.bf16.msra.mxu0 %v959
    %992 = vmatpush.bf16.msra.mxu0 %v957
    %993 = vmatpush.bf16.msra.mxu0 %v955
    %994 = vmatpush.bf16.msra.mxu0 %v953
    %995 = vmatpush.bf16.msra.mxu0 %v951
    %996 = vmatpush.bf16.msra.mxu0 %v949
    %997 = vmatpush.bf16.msra.mxu0 %v947
    %998 = vmatmul.bf16.gmra.mxu0 %v974
    %v999 = vpop.f32.mrf.mxu0
    %v1000 = vadd.f32 %v987, %v999
    %v1001 = vpop.f32.mrf.mxu0
    %1002 = vdwg.mxu0
    %1003 = vmatpush.bf16.msra.mxu0 %v946
    %1004 = vmatpush.bf16.msra.mxu0 %v944
    %1005 = vmatpush.bf16.msra.mxu0 %v942
    %1006 = vmatpush.bf16.msra.mxu0 %v940
    %1007 = vmatpush.bf16.msra.mxu0 %v938
    %1008 = vmatpush.bf16.msra.mxu0 %v936
    %1009 = vmatpush.bf16.msra.mxu0 %v934
    %1010 = vmatpush.bf16.msra.mxu0 %v932
    %1011 = vmatmul.bf16.gmra.mxu0 %v973
    %v1012 = vpop.f32.mrf.mxu0
    %v1013 = vadd.f32 %v970, %v1012
    %v1014 = vpop.f32.mrf.mxu0
    %1015 = vdwg.mxu0
    %1016 = vmatpush.bf16.msra.mxu0 %v962
    %1017 = vmatpush.bf16.msra.mxu0 %v960
    %1018 = vmatpush.bf16.msra.mxu0 %v958
    %1019 = vmatpush.bf16.msra.mxu0 %v956
    %1020 = vmatpush.bf16.msra.mxu0 %v954
    %1021 = vmatpush.bf16.msra.mxu0 %v952
    %1022 = vmatpush.bf16.msra.mxu0 %v950
    %1023 = vmatpush.bf16.msra.mxu0 %v948
    %1024 = vmatmul.bf16.gmra.mxu0 %v974
    %v1025 = vpop.f32.mrf.mxu0
    %v1026 = vadd.f32 %v1013, %v1025
    %v1027 = vpop.f32.mrf.mxu0
    %1028 = vdwg.mxu0
    %v1029 = vxor.u32 %v1000, 2147483648
    %v1030 = vxor.u32 %v1026, 2147483648
    %v1031 = vmul.f32 %v1029, 1.442695
    %v1032 = vpow.pop %v1031
    %v1033 = vmul.f32 %v1030, 1.442695
    %v1034 = vpow.pop %v1033
    %v1035 = vadd.f32 %v1032, 1.0
    %v1036 = vadd.f32 %v1034, 1.0
    %v1037 = vrcp.pop %v1035
    %v1038 = vmul.f32 %v1035, %v1037
    %v1039 = vsub.f32 1.0, %v1038
    %v1040 = vmul.f32 %v1037, %v1039
    %v1041 = vadd.f32 %v1037, %v1040
    %vm1042 = vweird.f32 %v1035
    %vm1043 = vweird.f32 %v1037
    %vm1044 = vmor %vm1042, %vm1043
    %v1045 = vsel %vm1044, %v1037, %v1041
    %v1046 = vand.u32 2147483647, %v1035
    %vm1047 = vcmp.eq.f32.partialorder %v1046, 8.507059e+37
    %v1048 = vand.u32 %v1035, 2147483648
    %v1049 = vor.u32 1.1754944e-38, %v1048
    %v1050 = vsel %vm1047, %v1049, %v1045
    %v1051 = vmul.f32 1.0, %v1050
    %v1052 = vrcp.pop %v1036
    %v1053 = vmul.f32 %v1036, %v1052
    %v1054 = vsub.f32 1.0, %v1053
    %v1055 = vmul.f32 %v1052, %v1054
    %v1056 = vadd.f32 %v1052, %v1055
    %vm1057 = vweird.f32 %v1036
    %vm1058 = vweird.f32 %v1052
    %vm1059 = vmor %vm1057, %vm1058
    %v1060 = vsel %vm1059, %v1052, %v1056
    %v1061 = vand.u32 2147483647, %v1036
    %vm1062 = vcmp.eq.f32.partialorder %v1061, 8.507059e+37
    %v1063 = vand.u32 %v1036, 2147483648
    %v1064 = vor.u32 1.1754944e-38, %v1063
    %v1065 = vsel %vm1062, %v1064, %v1060
    %v1066 = vmul.f32 1.0, %v1065
    %v1067 = vsub.f32 1.0, %v1051
    %v1068 = vsub.f32 1.0, %v1066
    %v1071 = vrot.slane %v1051, 7
    %v1072 = vrot.slane %v1066, 7
    %vm1075 = vcmask 1040384
    %v1076 = vsel %vm1075, %v1067, %v1071
    %v1077 = vsel %vm1075, %v1068, %v1072
    %v1080 = vrot.slane %v1077, 6
    %v1081 = vsel %vm216, %v1076, %v1080
    %1083 = vst [vmem:[#allocation3] sm:$0xf] %v1081
    // Predicated region
    $region30: #{tpu_custom_call.1} parent=1 // pred_check
      _
    $region31: #{tpu_custom_call.1} parent=1 // pred_check_branch
      %1085 = sbr.rel (0) target = $region33
    $region32: #{tpu_custom_call.1} parent=1 // pred_region
      %1087 = vsyncadd [#allocation4], 0
      %s1089 = sshll.u32 [#allocation3], 4
      %s1090 = int_to_ptr.vmem [resolvable:$true] %s1089
      %s1091 = sshll.u32 %s7, 4
      %s1092 = int_to_ptr.hbm [resolvable:$true] %s1091
      %1094 = dma.vmem_to_hbm [thread:$0]  %s1090, 64, %s1092, [#allocation4]
    $region33: #{tpu_custom_call.1} parent=1 // pred_fallthru
      _
    // Predicated region
    $region34: #{tpu_custom_call.1} parent=1 // pred_check
      _
    $region35: #{tpu_custom_call.1} parent=1 // pred_check_branch
      %1096 = sbr.rel (0) target = $region37
    $region36: #{tpu_custom_call.1} parent=1 // pred_region
      %1098 = dma.done [#allocation4], 64
    $region37: #{tpu_custom_call.1} parent=1 // pred_fallthru
      _
    %1099 = vsyncpa [#allocation4], 1

</llo_original>
